<compile_context>
chip_gen: v5e
topology: v5e:2x2
jax: 0.10.0
libtpu: 0.0.40
codegen_flags: <defaults>
</compile_context>

<pallas_src>
import jax
import jax.numpy as jnp
from jax.experimental import pallas as pl
from jax.experimental.pallas import tpu as pltpu


def _copy_kernel(x_ref, o_ref):
    # Hot path of Backbone.forward: features = extract_features(x), which for
    # the abstract base class is value-identity.
    o_ref[...] = x_ref[...]


# Lane-dense last-dim candidates (multiples of 128, widest first).
_LANE_CANDIDATES = (2048, 1024, 512, 256, 128)
# Per-block byte budget: with double-buffered input + output this keeps total
# VMEM usage ~16 MiB, comfortably inside every generation's scoped default.
_MAX_BLOCK_BYTES = 4 * 1024 * 1024


def _choose_2d_layout(n_elems: int):
    """Pick a lane-dense (rows, lane) factorization of n_elems, or None."""
    best = None
    for lane in _LANE_CANDIDATES:
        if n_elems % lane == 0:
            rows = n_elems // lane
            if rows % 8 == 0:
                return rows, lane          # ideal: sublane-aligned rows too
            if best is None:
                best = (rows, lane)        # lane-dense but rows not mult of 8
    return best                             # None if n_elems % 128 != 0


def _choose_row_block(rows: int, lane: int, itemsize: int) -> int:
    """Largest multiple-of-8 divisor of `rows` whose block fits the budget."""
    budget_rows = max(8, _MAX_BLOCK_BYTES // (lane * itemsize))
    budget_rows = (budget_rows // 8) * 8
    tm = min(rows, budget_rows)
    tm = (tm // 8) * 8
    while tm > 8 and rows % tm != 0:
        tm -= 8
    return max(tm, 8)


def _tiled_copy(x2d: jnp.ndarray) -> jnp.ndarray:
    rows, lane = x2d.shape
    tm = _choose_row_block(rows, lane, x2d.dtype.itemsize)
    grid = (rows // tm,)
    return pl.pallas_call(
        _copy_kernel,
        out_shape=jax.ShapeDtypeStruct(x2d.shape, x2d.dtype),
        grid=grid,
        in_specs=[pl.BlockSpec((tm, lane), lambda i: (i, 0))],
        out_specs=pl.BlockSpec((tm, lane), lambda i: (i, 0)),
        compiler_params=pltpu.CompilerParams(
            dimension_semantics=("parallel",)),
    )(x2d)


def _whole_array_copy(x2d: jnp.ndarray) -> jnp.ndarray:
    # Fallback for shapes that cannot be tiled cleanly (small / irregular).
    return pl.pallas_call(
        _copy_kernel,
        out_shape=jax.ShapeDtypeStruct(x2d.shape, x2d.dtype),
        in_specs=[pl.BlockSpec(x2d.shape, lambda: (0, 0))],
        out_specs=pl.BlockSpec(x2d.shape, lambda: (0, 0)),
    )(x2d)


def backbone_forward(x: jnp.ndarray, freeze_cnn: bool = False) -> jnp.ndarray:
    """Pallas equivalent of Backbone.forward (abstract base-class semantics)."""
    orig_shape = x.shape
    n_elems = x.size
    layout = _choose_2d_layout(n_elems)

    if layout is not None:
        rows, lane = layout
        # Pure row-major reshape of a contiguous array: metadata-only, no
        # transpose, no extra HBM pass outside the kernel.
        x2d = x.reshape(rows, lane)
        if rows % 8 == 0:
            out2d = _tiled_copy(x2d)
        else:
            out2d = _whole_array_copy(x2d)
        features = out2d.reshape(orig_shape)
    else:
        # TODO(synk): element count not a multiple of 128 — fall back to a
        # single whole-array block copy on the natural (.., W) layout.
        x2d = x.reshape(-1, orig_shape[-1])
        features = _whole_array_copy(x2d).reshape(orig_shape)

    if freeze_cnn:
        # torch.no_grad() analogue: block gradient flow, values unchanged.
        features = jax.lax.stop_gradient(features)
    return features


if __name__ == "__main__":
    key = jax.random.PRNGKey(0)
    # Small NCHW input consistent with a CNN backbone: batch=2, channels=4, 16x16.
    x = jax.random.normal(key, (2, 4, 16, 16), dtype=jnp.float32)

    y = backbone_forward(x, freeze_cnn=False)
    y = jax.block_until_ready(y)

    y_frozen = backbone_forward(x, freeze_cnn=True)
    y_frozen = jax.block_until_ready(y_frozen)

    assert y.shape == x.shape and y.dtype == x.dtype
    assert jnp.allclose(y, x), "forward passthrough mismatch"
    assert jnp.allclose(y_frozen, x), "freeze_cnn passthrough mismatch"

    # A second, lane-dense-by-construction shape exercising the tiled path.
    x2 = jax.random.normal(key, (2, 8, 16, 128), dtype=jnp.float32)
    y2 = jax.block_until_ready(backbone_forward(x2))
    assert jnp.allclose(y2, x2), "tiled passthrough mismatch"

    print("KERNEL_OK")
</pallas_src>

<mosaic_0001>
module attributes {stable_mosaic.version = 11 : i64} {
  func.func @_copy_kernel(%arg0: i32, %arg1: memref<8x256xf32, #tpu.memory_space<vmem>>, %arg2: memref<8x256xf32, #tpu.memory_space<vmem>>) attributes {dimension_semantics = [#tpu.dimension_semantics<parallel>], iteration_bounds = array<i64: 1>, scalar_prefetch = 0 : i64, scratch_operands = 0 : i64, tpu.core_type = #tpu.core_type<tc>, window_params = [{transform_indices = @transform_0, window_bounds = array<i64: 8, 256>}, {transform_indices = @transform_1, window_bounds = array<i64: 8, 256>}]} {
    %c0 = arith.constant 0 : index
    %c0_0 = arith.constant 0 : index
    %0 = vector.load %arg1[%c0, %c0_0] : memref<8x256xf32, #tpu.memory_space<vmem>>, vector<8x256xf32>
    %c0_1 = arith.constant 0 : index
    %c0_2 = arith.constant 0 : index
    %1 = vector.load %arg2[%c0_1, %c0_2] : memref<8x256xf32, #tpu.memory_space<vmem>>, vector<8x256xf32>
    tpu.vector_store %arg2[%c0_1, %c0_2], %0 {strides = array<i32>} : memref<8x256xf32, #tpu.memory_space<vmem>>, vector<8x256xf32>,
    return
  }
  func.func @transform_0(%arg0: i32) -> (i32, i32) {
    %c0_i32 = arith.constant 0 : i32
    %c0_i32_0 = arith.constant 0 : i32
    return %arg0, %c0_i32 : i32, i32
  }
  func.func @transform_1(%arg0: i32) -> (i32, i32) {
    %c0_i32 = arith.constant 0 : i32
    %c0_i32_0 = arith.constant 0 : i32
    return %arg0, %c0_i32 : i32, i32
  }
}

</mosaic_0001>

<llo_original>
// kernel: tpu_custom_call.1
$region0: #{tpu_custom_call.1}
  #allocation0 [shape = 'u32[]', space=smem, size = 0x4, offset = 0x4, fixed_abs, tag = 'smem constant byte address 0x4 - core index']
  #allocation1 [shape = 'u32[72,128]{1,0:T(1,128)}', space=vmem, size = 0x9000, scoped, tag = 'internal scratch']
  %s0 = inlined_call_operand.hbm [shape: f32[8,256], index: 0, kind: input, shape index: {}]
  %s1 = inlined_call_operand.hbm [shape: f32[8,256], index: 1, kind: output, shape index: {}]
  %s2 = sld [smem:[#allocation0]]
  $region18: #{tpu_custom_call.1} parent=0
    _
  %s4 = ssub.s32 1, %s2
  %s5 = scalar_select 0, %s4, %s2
  $region1: #{tpu_custom_call.1} parent=0
    #allocation2 [shape = 'u8[8192]{0}', space=vmem, size = 0x2000, scoped, tag = 'input window, operand 0, single buffered']
    #allocation3 [shape = 's32[1]{0}', space=sflag, size = 0x4, scoped, tag = 'scoped memory for tpu_custom_call.1']
    #allocation4 [shape = 's32[1]{0}', space=sflag, size = 0x4, scoped, tag = 'scoped memory for tpu_custom_call.1']
    #allocation5 [shape = 'u8[8192]{0}', space=vmem, size = 0x2000, scoped, tag = 'output window, operand 0, single buffered']
    %6 = vsyncpa [#allocation3], 0
    %7 = vsyncpa [#allocation4], 0
    // Predicated region
    $region2: #{tpu_custom_call.1} parent=1 // pred_check
      _
    $region3: #{tpu_custom_call.1} parent=1 // pred_check_branch
      %9 = sbr.rel (0) target = $region5
    $region4: #{tpu_custom_call.1} parent=1 // pred_region
      %11 = vsyncadd [#allocation3], 0
      %s13 = sshll.u32 %s0, 4
      %s14 = int_to_ptr.hbm [resolvable:$true] %s13
      %s15 = sshll.u32 [#allocation2], 4
      %s16 = int_to_ptr.vmem [resolvable:$true] %s15
      %18 = dma.hbm_to_vmem [thread:$0]  %s14, 256, %s16, [#allocation3]
    $region5: #{tpu_custom_call.1} parent=1 // pred_fallthru
      _
    // Predicated region
    $region6: #{tpu_custom_call.1} parent=1 // pred_check
      _
    $region7: #{tpu_custom_call.1} parent=1 // pred_check_branch
      %20 = sbr.rel (0) target = $region9
    $region8: #{tpu_custom_call.1} parent=1 // pred_region
      %22 = dma.done [#allocation3], 256
    $region9: #{tpu_custom_call.1} parent=1 // pred_fallthru
      _
    %v23 = vld [vmem:[#allocation2] sm:$0xff]
    %v24 = vld [vmem:[#allocation2 + $0x8] sm:$0xff]
    %25 = vst [vmem:[#allocation5] sm:$0xff] %v23
    %26 = vst [vmem:[#allocation5 + $0x8] sm:$0xff] %v24
    // Predicated region
    $region10: #{tpu_custom_call.1} parent=1 // pred_check
      _
    $region11: #{tpu_custom_call.1} parent=1 // pred_check_branch
      %28 = sbr.rel (0) target = $region13
    $region12: #{tpu_custom_call.1} parent=1 // pred_region
      %30 = vsyncadd [#allocation4], 0
      %s32 = sshll.u32 [#allocation5], 4
      %s33 = int_to_ptr.vmem [resolvable:$true] %s32
      %s34 = sshll.u32 %s1, 4
      %s35 = int_to_ptr.hbm [resolvable:$true] %s34
      %37 = dma.vmem_to_hbm [thread:$0]  %s33, 256, %s35, [#allocation4]
    $region13: #{tpu_custom_call.1} parent=1 // pred_fallthru
      _
    // Predicated region
    $region14: #{tpu_custom_call.1} parent=1 // pred_check
      _
    $region15: #{tpu_custom_call.1} parent=1 // pred_check_branch
      %39 = sbr.rel (0) target = $region17
    $region16: #{tpu_custom_call.1} parent=1 // pred_region
      %41 = dma.done [#allocation4], 256
    $region17: #{tpu_custom_call.1} parent=1 // pred_fallthru
      _
    %42 = vsyncpa [#allocation3], 1
    %43 = vsyncpa [#allocation4], 1

</llo_original>
